<compile_context>
chip_gen: v7x
topology: tpu7x:2x2x1
jax: 0.10.0
libtpu: 0.0.40
codegen_flags: <defaults>
</compile_context>

<pallas_src>
import functools

import numpy as np
import jax
import jax.numpy as jnp
from jax.experimental import pallas as pl
from jax.experimental.pallas import tpu as pltpu


def _round_up(v, m):
    return ((v + m - 1) // m) * m


def _round_down(v, m):
    return (v // m) * m


_DEFAULT_BLOCK_BYTES = 8 * 1024 * 1024     # per (input+output) block, double-buffered
_DEFAULT_VMEM_LIMIT = 32 * 1024 * 1024     # safe scoped limit on every generation


def _hw_params():
    """Best-effort hardware probe; any failure falls back to safe defaults."""
    kind = ""
    try:
        kind = jax.devices()[0].device_kind.lower()
    except Exception:
        pass
    # Chips whose two TensorCores share the "parallel" grid axes.
    multi_tc = any(tag in kind for tag in ("v4", "v5p", "7x"))
    if "7x" in kind:
        # v7x: ~3.2 TB/s HBM per TC but only 64 MiB VMEM.  16 MiB blocks keep the
        # ~0.35 us per-step overhead small; 2 x 16 MiB double-buffered (+ small
        # extras) fits comfortably under a 48 MiB scoped limit.
        return 16 * 1024 * 1024, 48 * 1024 * 1024, multi_tc
    return _DEFAULT_BLOCK_BYTES, _DEFAULT_VMEM_LIMIT, multi_tc


def _pick_fold(N, HW, itemsize):
    """Fold factor r (a divisor of N, r <= 16) for the small-spatial fast path."""
    if N <= 1 or HW * itemsize >= 512:
        return 1
    best_r, best_key = 1, (-1, -1.0, 0)
    for r in range(2, min(N, 16) + 1):
        if N % r:
            continue
        lanes = r * HW
        key = (
            1 if lanes * itemsize >= 1024 else 0,          # DMA rows >= ~1 KiB
            lanes / float(_round_up(lanes, 128)),          # lane utilization
            r,                                             # then prefer larger r
        )
        if key > best_key:
            best_key, best_r = key, r
    return best_r


# --------------------------------------------------------------------------- #
# Kernel bodies
# --------------------------------------------------------------------------- #
def _gap_fold_kernel(x_ref, seg_ref, o_ref, *, inv):
    # x: (T, r*HW) with r original rows folded into the lane axis.
    # seg: (r*HW, r) 0/1 segment-sum matrix (block index is constant -> resident).
    x = x_ref[...].astype(jnp.float32)
    sums = jnp.dot(
        x, seg_ref[...],
        preferred_element_type=jnp.float32,
        precision=jax.lax.Precision.HIGHEST,   # full-f32 MXU path
    )
    o_ref[...] = (sums * inv).astype(o_ref.dtype)


def _gap_simple_kernel(x_ref, o_ref, *, inv):
    # Whole spatial row fits in the block: no scratch, no masking.
    x = x_ref[...].astype(jnp.float32)
    o_ref[...] = (jnp.sum(x, axis=-1, keepdims=True) * inv).astype(o_ref.dtype)


def _gap_chunked_kernel(x_ref, o_ref, acc_ref, *, hw_total, hw_chunk, mask_lanes):
    # Grid: (row_blocks [parallel], hw_chunks [arbitrary, reduction]).
    k = pl.program_id(1)

    @pl.when(k == 0)
    def _():
        acc_ref[...] = jnp.zeros_like(acc_ref)

    x = x_ref[...].astype(jnp.float32)
    if mask_lanes:
        lane = jax.lax.broadcasted_iota(jnp.int32, x.shape, 1)
        x = jnp.where(k * hw_chunk + lane < hw_total, x, 0.0)
    acc_ref[...] += jnp.sum(x, axis=-1, keepdims=True)

    @pl.when(k == pl.num_programs(1) - 1)
    def _():
        o_ref[...] = (acc_ref[...] * (1.0 / hw_total)).astype(o_ref.dtype)


# --------------------------------------------------------------------------- #
# Host wrapper
# --------------------------------------------------------------------------- #
def global_avg_pool(x):
    """Pallas equivalent of GlobalAvgPool.forward: mean over the last two dims."""
    *lead, H, W = x.shape
    N = int(np.prod(lead)) if lead else 1
    HW = H * W
    dtype = x.dtype
    itemsize = np.dtype(dtype).itemsize
    sub = max(8, 32 // itemsize)             # sublane packing: 8/16/32 rows
    block_bytes, vmem_limit, multi_tc = _hw_params()
    inv = 1.0 / float(HW)

    r = _pick_fold(N, HW, itemsize)
    rows_total = N // r
    lanes = r * HW
    x2 = x.reshape(rows_total, lanes)        # free reshape (row-major contiguous)

    lanes_pad = _round_up(lanes, 128)
    # Budget rows so that (input block + lane-padded output block) <= block_bytes;
    # with double buffering that stays well under the scoped VMEM limit.
    rows_budget = _round_down(block_bytes // ((lanes_pad + 128) * itemsize), sub)

    cost = pl.CostEstimate(
        flops=2 * N * HW,
        transcendentals=0,
        bytes_accessed=N * HW * itemsize + N * itemsize,
    )

    if rows_budget >= sub:
        # ---- single lane-chunk: whole (folded) spatial row fits in one block ----
        tile_rows = min(rows_budget, _round_up(rows_total, sub))
        if multi_tc and rows_total >= 2 * sub:
            # Keep >= 2 (preferably an even number of) row blocks so both
            # TensorCores stay busy on megacore / v7x chips.
            tile_rows = min(tile_rows, _round_up(pl.cdiv(rows_total, 2), sub))
            nb = pl.cdiv(rows_total, tile_rows)
            if nb > 1 and nb % 2:
                tile_rows = _round_up(pl.cdiv(rows_total, nb + 1), sub)
        nb = pl.cdiv(rows_total, tile_rows)
        cparams = pltpu.CompilerParams(
            dimension_semantics=("parallel",), vmem_limit_bytes=vmem_limit)

        if r > 1:
            # Small-HW fast path: segmented lane sums via one MXU matmul.
            seg = (
                jnp.arange(lanes, dtype=jnp.int32)[:, None] // HW
                == jnp.arange(r, dtype=jnp.int32)[None, :]
            ).astype(jnp.float32)
            out2 = pl.pallas_call(
                functools.partial(_gap_fold_kernel, inv=inv),
                out_shape=jax.ShapeDtypeStruct((rows_total, r), dtype),
                grid=(nb,),
                in_specs=[
                    pl.BlockSpec((tile_rows, lanes), lambda i: (i, 0)),
                    pl.BlockSpec((lanes, r), lambda i: (0, 0)),
                ],
                out_specs=pl.BlockSpec((tile_rows, r), lambda i: (i, 0)),
                compiler_params=cparams,
                cost_estimate=cost,
            )(x2, seg)
            out = out2.reshape(N)
        else:
            out2 = pl.pallas_call(
                functools.partial(_gap_simple_kernel, inv=inv),
                out_shape=jax.ShapeDtypeStruct((rows_total, 1), dtype),
                grid=(nb,),
                in_specs=[pl.BlockSpec((tile_rows, lanes), lambda i: (i, 0))],
                out_specs=pl.BlockSpec((tile_rows, 1), lambda i: (i, 0)),
                compiler_params=cparams,
                cost_estimate=cost,
            )(x2)
            out = out2[:, 0]
    else:
        # ---- huge spatial extent: chunk H*W on a reduction grid axis ----
        tile_rows = min(256, _round_up(rows_total, sub))
        hw_chunk = _round_down(block_bytes // (tile_rows * itemsize), 128)
        hw_chunk = max(128, min(hw_chunk, _round_up(HW, 128)))
        mask_lanes = (HW % hw_chunk) != 0
        nb = pl.cdiv(rows_total, tile_rows)
        nc = pl.cdiv(HW, hw_chunk)
        out2 = pl.pallas_call(
            functools.partial(
                _gap_chunked_kernel, hw_total=HW, hw_chunk=hw_chunk,
                mask_lanes=mask_lanes),
            out_shape=jax.ShapeDtypeStruct((rows_total, 1), dtype),
            grid=(nb, nc),
            in_specs=[pl.BlockSpec((tile_rows, hw_chunk), lambda i, k: (i, k))],
            out_specs=pl.BlockSpec((tile_rows, 1), lambda i, k: (i, 0)),
            scratch_shapes=[pltpu.VMEM((tile_rows, 1), jnp.float32)],
            compiler_params=pltpu.CompilerParams(
                dimension_semantics=("parallel", "arbitrary"),
                vmem_limit_bytes=vmem_limit),
            cost_estimate=cost,
        )(x2)
        out = out2[:, 0]

    return out.reshape(*lead) if lead else out.reshape(())


def _reference(x):
    # Pure-JAX reference mirroring the PyTorch forward.
    return x.reshape(*x.shape[:-2], -1).mean(-1)


if __name__ == "__main__":
    key = jax.random.PRNGKey(0)

    # Small NCHW input consistent with the module's usage: (B, C, H, W).
    x = jax.random.normal(key, (2, 4, 16, 16), dtype=jnp.float32)
    y = global_avg_pool(x)
    jax.block_until_ready(y)
    y_ref = _reference(x)
    assert y.shape == y_ref.shape == (2, 4), (y.shape, y_ref.shape)
    np.testing.assert_allclose(np.asarray(y), np.asarray(y_ref), rtol=1e-5, atol=1e-5)

    # Odd shapes: exercises the small-HW fold path (r=15) and partial row blocks.
    x2 = jax.random.normal(jax.random.PRNGKey(1), (3, 5, 7, 9), dtype=jnp.float32)
    y2 = global_avg_pool(x2)
    jax.block_until_ready(y2)
    np.testing.assert_allclose(
        np.asarray(y2), np.asarray(_reference(x2)), rtol=1e-5, atol=1e-5
    )

    # Canonical 7x7 global pooling: exercises the fold path with r=16 and
    # multiple row blocks.
    x3 = jax.random.normal(jax.random.PRNGKey(2), (8, 64, 7, 7), dtype=jnp.float32)
    y3 = global_avg_pool(x3)
    jax.block_until_ready(y3)
    np.testing.assert_allclose(
        np.asarray(y3), np.asarray(_reference(x3)), rtol=1e-5, atol=1e-5
    )

    print("KERNEL_OK")
</pallas_src>

<mosaic_0001>
module attributes {stable_mosaic.version = 11 : i64} {
  func.func @_gap_simple_kernel(%arg0: i32, %arg1: memref<8x256xf32, #tpu.memory_space<vmem>>, %arg2: memref<8x1xf32, #tpu.memory_space<vmem>>) attributes {dimension_semantics = [#tpu.dimension_semantics<parallel>], iteration_bounds = array<i64: 1>, scalar_prefetch = 0 : i64, scratch_operands = 0 : i64, tpu.core_type = #tpu.core_type<tc>, window_params = [{transform_indices = @transform_0, window_bounds = array<i64: 8, 256>}, {transform_indices = @transform_1, window_bounds = array<i64: 8, 1>}]} {
    %c0 = arith.constant 0 : index
    %c0_0 = arith.constant 0 : index
    %0 = vector.load %arg1[%c0, %c0_0] : memref<8x256xf32, #tpu.memory_space<vmem>>, vector<8x256xf32>
    %cst = arith.constant dense<0.000000e+00> : vector<8xf32>
    %1 = vector.multi_reduction <add>, %0, %cst [1] : vector<8x256xf32> to vector<8xf32>
    %2 = vector.shape_cast %1 : vector<8xf32> to vector<8x1xf32>
    %cst_1 = arith.constant 3.906250e-03 : f32
    %3 = vector.broadcast %cst_1 : f32 to vector<8x1xf32>
    %4 = arith.mulf %2, %3 : vector<8x1xf32>
    %c0_2 = arith.constant 0 : index
    %c0_3 = arith.constant 0 : index
    %5 = vector.load %arg2[%c0_2, %c0_3] : memref<8x1xf32, #tpu.memory_space<vmem>>, vector<8x1xf32>
    tpu.vector_store %arg2[%c0_2, %c0_3], %4 {strides = array<i32>} : memref<8x1xf32, #tpu.memory_space<vmem>>, vector<8x1xf32>,
    return
  }
  func.func @transform_0(%arg0: i32) -> (i32, i32) {
    %c0_i32 = arith.constant 0 : i32
    %c0_i32_0 = arith.constant 0 : i32
    return %arg0, %c0_i32 : i32, i32
  }
  func.func @transform_1(%arg0: i32) -> (i32, i32) {
    %c0_i32 = arith.constant 0 : i32
    %c0_i32_0 = arith.constant 0 : i32
    return %arg0, %c0_i32 : i32, i32
  }
}

</mosaic_0001>

<llo_original>
// kernel: tpu_custom_call.1
$region0: #{tpu_custom_call.1}
  #allocation0 [shape = 'u32[]', space=smem, size = 0x4, offset = 0x4, fixed_abs, tag = 'smem constant byte address 0x4 - core index']
  #allocation1 [shape = 'u32[144,128]{1,0:T(1,128)}', space=vmem, size = 0x12000, scoped, tag = 'internal scratch']
  %s0 = inlined_call_operand.hbm [shape: f32[8,256], index: 0, kind: input, shape index: {}]
  %s1 = inlined_call_operand.vmem [shape: f32[8,1], index: 1, kind: output, shape index: {}]
  %s2 = sld [smem:[#allocation0]]
  $region18: #{tpu_custom_call.1} parent=0
    _
  %s4 = ssub.s32 1, %s2
  %s5 = scalar_select 0, %s4, %s2
  $region1: #{tpu_custom_call.1} parent=0
    #allocation2 [shape = 'u8[8192]{0}', space=vmem, size = 0x2000, scoped, tag = 'input window, operand 0, single buffered']
    #allocation3 [shape = 's32[1]{0}', space=sflag, size = 0x4, scoped, tag = 'scoped memory for tpu_custom_call.1']
    %6 = vsyncpa [#allocation3], 0
    // Predicated region
    $region2: #{tpu_custom_call.1} parent=1 // pred_check
      _
    $region3: #{tpu_custom_call.1} parent=1 // pred_check_branch
      %8 = sbr.rel (0) target = $region5
    $region4: #{tpu_custom_call.1} parent=1 // pred_region
      %s10 = ssub.s32 256, 256
      %11 = vsyncadd [#allocation3], %s10
      %s13 = sshll.u32 [#allocation2], 4
      %s14 = int_to_ptr.vmem [resolvable:$true] %s13
      %16 = dma.hbm_to_vmem [thread:$0]  %s0, 256, %s14, [#allocation3]
    $region5: #{tpu_custom_call.1} parent=1 // pred_fallthru
      _
    // Predicated region
    $region6: #{tpu_custom_call.1} parent=1 // pred_check
      _
    $region7: #{tpu_custom_call.1} parent=1 // pred_check_branch
      %18 = sbr.rel (0) target = $region9
    $region8: #{tpu_custom_call.1} parent=1 // pred_region
      %19 = dma.done [#allocation3], 256
    $region9: #{tpu_custom_call.1} parent=1 // pred_fallthru
      _
    %v20 = vld [vmem:[#allocation2] sm:$0xff]
    %v21 = vld [vmem:[#allocation2 + $0x8] sm:$0xff]
    %v22 = vadd.f32 %v20, %v21
    %23 = vadd.xlane.f32.xlu0 %v22
    %v24 = vpop.xlane.xlu0 %23
    %v25 = vmul.f32 %v24, 0.00390625
    %vm26 = vcmask 7168
    %27 = vst.msk [vmem:[%s1] sm:$0xff] %vm26, %v25
    // Predicated region
    $region10: #{tpu_custom_call.1} parent=1 // pred_check
      _
    $region11: #{tpu_custom_call.1} parent=1 // pred_check_branch
      %29 = sbr.rel (0) target = $region13
    $region12: #{tpu_custom_call.1} parent=1 // pred_region
      _
    $region13: #{tpu_custom_call.1} parent=1 // pred_fallthru
      _
    // Predicated region
    $region14: #{tpu_custom_call.1} parent=1 // pred_check
      _
    $region15: #{tpu_custom_call.1} parent=1 // pred_check_branch
      %31 = sbr.rel (0) target = $region17
    $region16: #{tpu_custom_call.1} parent=1 // pred_region
      _
    $region17: #{tpu_custom_call.1} parent=1 // pred_fallthru
      _
    %32 = vsyncpa [#allocation3], 1

</llo_original>
